<compile_context>
chip_gen: v6e
topology: v6e:2x2x1
jax: 0.10.0
libtpu: 0.0.40
codegen_flags: <defaults>
</compile_context>

<pallas_src>
import math
from functools import partial

import numpy as np
import jax
import jax.numpy as jnp
from jax import lax
from jax.experimental import pallas as pl
from jax.experimental.pallas import tpu as pltpu


def make_gaussian_weight(channels: int, kernel_size: int, sigma: float, dim: int = 2) -> jnp.ndarray:
    """Replicates GaussianSmoothing.__init__ (dim=2) exactly, including its
    non-standard ((x-mean)/(2*sigma))**2 exponent. Used only for the reference check."""
    ks = [kernel_size] * dim
    sg = [sigma] * dim
    grids = np.meshgrid(*[np.arange(s, dtype=np.float32) for s in ks], indexing="ij")
    kernel = np.ones(ks, dtype=np.float32)
    for size, std, mgrid in zip(ks, sg, grids):
        mean = (size - 1) / 2.0
        kernel = kernel * (1.0 / (std * math.sqrt(2 * math.pi))
                           * np.exp(-(((mgrid - mean) / (2 * std)) ** 2)))
    kernel = kernel / np.sum(kernel)
    kernel = kernel.reshape(1, 1, *kernel.shape)      # (1, 1, K, K)
    kernel = np.tile(kernel, (channels, 1, 1, 1))     # (C, 1, K, K)
    return jnp.asarray(kernel, dtype=jnp.float32)


def make_gaussian_taps_1d(kernel_size: int, sigma: float) -> tuple:
    """Normalized 1-D taps. The module's normalized 2-D kernel equals the outer product
    of these taps, so the separable 2x1-D conv reproduces it (up to fp rounding).
    Keeps the module's quirky ((x-mean)/(2*sigma))**2 exponent on purpose."""
    t = np.arange(kernel_size, dtype=np.float32)
    mean = (kernel_size - 1) / 2.0
    g = (1.0 / (sigma * math.sqrt(2.0 * math.pi))) * np.exp(-(((t - mean) / (2.0 * sigma)) ** 2))
    g = g / g.sum()
    return tuple(float(v) for v in g)


def _gauss_sep_kernel(x_ref, o_ref, *, taps, Ho: int, Wo: int):
    # x_ref: (1, H, W, C) NHWC block;  o_ref: (1, Ho, Wo, C)
    K = len(taps)

    # Pass 1: horizontal (along W, the sublane dim). Shifted windows are read straight
    # from the ref so the load unit applies the offset; each tap is an immediate.
    acc = taps[0] * x_ref[0, :, 0:Wo, :].astype(jnp.float32)
    for v in range(1, K):
        acc = acc + taps[v] * x_ref[0, :, v:v + Wo, :].astype(jnp.float32)

    # Pass 2: vertical (along H, the untiled leading dim -> slicing is just vreg
    # selection, no lane/sublane shuffles).
    out = taps[0] * acc[0:Ho]
    for u in range(1, K):
        out = out + taps[u] * acc[u:u + Ho]

    o_ref[0] = out.astype(o_ref.dtype)


def gaussian_smoothing_pallas(x: jnp.ndarray, kernel_size: int, sigma: float) -> jnp.ndarray:
    """x: (N, C, H, W) -> (N, C, H-K+1, W-K+1); matches F.conv2d(x, weight, groups=C)."""
    N, C, H, W = x.shape
    K = int(kernel_size)
    Ho, Wo = H - K + 1, W - K + 1
    taps = make_gaussian_taps_1d(K, float(sigma))

    # NHWC: channels live on the lane axis (lane-dense, unmasked stores when C — or a
    # wrapper-side folded N*C — is large); the conv never shifts along the lane dim.
    x_nhwc = jnp.transpose(x, (0, 2, 3, 1))

    kernel_fn = partial(_gauss_sep_kernel, taps=taps, Ho=Ho, Wo=Wo)

    # TODO(synk): for very large H*W*C (esp. v7x's 64 MiB VMEM) row-tile H with a K-1
    # halo (pl.Element index_map / manual DMA) and set vmem_limit_bytes explicitly.
    out_nhwc = pl.pallas_call(
        kernel_fn,
        out_shape=jax.ShapeDtypeStruct((N, Ho, Wo, C), x.dtype),
        grid_spec=pltpu.PrefetchScalarGridSpec(
            num_scalar_prefetch=0,
            grid=(N,),
            in_specs=[pl.BlockSpec((1, H, W, C), lambda n: (n, 0, 0, 0))],
            out_specs=pl.BlockSpec((1, Ho, Wo, C), lambda n: (n, 0, 0, 0)),
        ),
        compiler_params=pltpu.CompilerParams(
            dimension_semantics=("parallel",)),
    )(x_nhwc)

    return jnp.transpose(out_nhwc, (0, 3, 1, 2))


def _reference(x, weight, channels):
    # jax.lax depthwise conv for verification (VALID padding, groups=channels).
    return lax.conv_general_dilated(
        x, weight,
        window_strides=(1, 1), padding="VALID",
        dimension_numbers=("NCHW", "OIHW", "NCHW"),
        feature_group_count=channels)


if __name__ == "__main__":
    N, C, H, W = 2, 4, 16, 16
    K, sigma = 3, 1.0

    key = jax.random.PRNGKey(0)
    x = jax.random.normal(key, (N, C, H, W), dtype=jnp.float32)

    out = jax.block_until_ready(gaussian_smoothing_pallas(x, K, sigma))

    weight = make_gaussian_weight(C, K, sigma, dim=2)   # exact PyTorch-formula 2-D weight
    ref = jax.block_until_ready(_reference(x, weight, C))

    assert out.shape == (N, C, H - K + 1, W - K + 1), out.shape
    np.testing.assert_allclose(np.asarray(out), np.asarray(ref), rtol=1e-5, atol=1e-5)

    print("KERNEL_OK")
</pallas_src>

<mosaic_0001>
module attributes {stable_mosaic.version = 11 : i64} {
  func.func @_gauss_sep_kernel(%arg0: i32, %arg1: memref<1x16x16x4xf32, #tpu.memory_space<vmem>>, %arg2: memref<1x14x14x4xf32, #tpu.memory_space<vmem>>) attributes {dimension_semantics = [#tpu.dimension_semantics<parallel>], iteration_bounds = array<i64: 2>, scalar_prefetch = 0 : i64, scratch_operands = 0 : i64, tpu.core_type = #tpu.core_type<tc>, window_params = [{transform_indices = @transform_0, window_bounds = array<i64: 1, 16, 16, 4>}, {transform_indices = @transform_1, window_bounds = array<i64: 1, 14, 14, 4>}]} {
    %c0 = arith.constant 0 : index
    %c0_0 = arith.constant 0 : index
    %c0_1 = arith.constant 0 : index
    %c0_2 = arith.constant 0 : index
    %0 = vector.load %arg1[%c0, %c0_0, %c0_1, %c0_2] : memref<1x16x16x4xf32, #tpu.memory_space<vmem>>, vector<1x16x14x4xf32>
    %1 = vector.shape_cast %0 : vector<1x16x14x4xf32> to vector<16x14x4xf32>
    %cst = arith.constant 0.304504305 : f32
    %2 = vector.broadcast %cst : f32 to vector<16x14x4xf32>
    %3 = arith.mulf %2, %1 : vector<16x14x4xf32>
    %c0_3 = arith.constant 0 : index
    %c0_4 = arith.constant 0 : index
    %c1 = arith.constant 1 : index
    %c0_5 = arith.constant 0 : index
    %4 = vector.load %arg1[%c0_3, %c0_4, %c1, %c0_5] : memref<1x16x16x4xf32, #tpu.memory_space<vmem>>, vector<1x16x14x4xf32>
    %5 = vector.shape_cast %4 : vector<1x16x14x4xf32> to vector<16x14x4xf32>
    %cst_6 = arith.constant 0.3909913 : f32
    %6 = vector.broadcast %cst_6 : f32 to vector<16x14x4xf32>
    %7 = arith.mulf %6, %5 : vector<16x14x4xf32>
    %8 = arith.addf %3, %7 : vector<16x14x4xf32>
    %c0_7 = arith.constant 0 : index
    %c0_8 = arith.constant 0 : index
    %c2 = arith.constant 2 : index
    %c0_9 = arith.constant 0 : index
    %9 = vector.load %arg1[%c0_7, %c0_8, %c2, %c0_9] : memref<1x16x16x4xf32, #tpu.memory_space<vmem>>, vector<1x16x14x4xf32>
    %10 = vector.shape_cast %9 : vector<1x16x14x4xf32> to vector<16x14x4xf32>
    %cst_10 = arith.constant 0.304504305 : f32
    %11 = vector.broadcast %cst_10 : f32 to vector<16x14x4xf32>
    %12 = arith.mulf %11, %10 : vector<16x14x4xf32>
    %13 = arith.addf %8, %12 : vector<16x14x4xf32>
    %14 = vector.extract_strided_slice %13 {offsets = [0, 0, 0], sizes = [14, 14, 4], strides = [1, 1, 1]} : vector<16x14x4xf32> to vector<14x14x4xf32>
    %cst_11 = arith.constant 0.304504305 : f32
    %15 = vector.broadcast %cst_11 : f32 to vector<14x14x4xf32>
    %16 = arith.mulf %15, %14 : vector<14x14x4xf32>
    %17 = vector.extract_strided_slice %13 {offsets = [1, 0, 0], sizes = [14, 14, 4], strides = [1, 1, 1]} : vector<16x14x4xf32> to vector<14x14x4xf32>
    %cst_12 = arith.constant 0.3909913 : f32
    %18 = vector.broadcast %cst_12 : f32 to vector<14x14x4xf32>
    %19 = arith.mulf %18, %17 : vector<14x14x4xf32>
    %20 = arith.addf %16, %19 : vector<14x14x4xf32>
    %21 = vector.extract_strided_slice %13 {offsets = [2, 0, 0], sizes = [14, 14, 4], strides = [1, 1, 1]} : vector<16x14x4xf32> to vector<14x14x4xf32>
    %cst_13 = arith.constant 0.304504305 : f32
    %22 = vector.broadcast %cst_13 : f32 to vector<14x14x4xf32>
    %23 = arith.mulf %22, %21 : vector<14x14x4xf32>
    %24 = arith.addf %20, %23 : vector<14x14x4xf32>
    %c0_14 = arith.constant 0 : index
    %c0_15 = arith.constant 0 : index
    %c0_16 = arith.constant 0 : index
    %c0_17 = arith.constant 0 : index
    %25 = vector.load %arg2[%c0_14, %c0_15, %c0_16, %c0_17] : memref<1x14x14x4xf32, #tpu.memory_space<vmem>>, vector<1x14x14x4xf32>
    %26 = vector.shape_cast %25 : vector<1x14x14x4xf32> to vector<14x14x4xf32>
    %27 = vector.shape_cast %24 : vector<14x14x4xf32> to vector<1x14x14x4xf32>
    tpu.vector_store %arg2[%c0_14, %c0_15, %c0_16, %c0_17], %27 {strides = array<i32>} : memref<1x14x14x4xf32, #tpu.memory_space<vmem>>, vector<1x14x14x4xf32>,
    return
  }
  func.func @transform_0(%arg0: i32) -> (i32, i32, i32, i32) {
    %c0_i32 = arith.constant 0 : i32
    %c0_i32_0 = arith.constant 0 : i32
    %c0_i32_1 = arith.constant 0 : i32
    %c0_i32_2 = arith.constant 0 : i32
    return %arg0, %c0_i32, %c0_i32_0, %c0_i32_1 : i32, i32, i32, i32
  }
  func.func @transform_1(%arg0: i32) -> (i32, i32, i32, i32) {
    %c0_i32 = arith.constant 0 : i32
    %c0_i32_0 = arith.constant 0 : i32
    %c0_i32_1 = arith.constant 0 : i32
    %c0_i32_2 = arith.constant 0 : i32
    return %arg0, %c0_i32, %c0_i32_0, %c0_i32_1 : i32, i32, i32, i32
  }
}

</mosaic_0001>

<llo_original>
// kernel: tpu_custom_call.1
$region0: #{tpu_custom_call.1}
  #allocation0 [shape = 'u32[]', space=smem, size = 0x4, offset = 0x4, fixed_abs, tag = 'smem constant byte address 0x4 - core index']
  #allocation1 [shape = 'u32[144,128]{1,0:T(1,128)}', space=vmem, size = 0x12000, scoped, tag = 'internal scratch']
  %s0 = inlined_call_operand.vmem [shape: f32[2,16,16,4], index: 0, kind: input, shape index: {}]
  %s1 = inlined_call_operand.vmem [shape: f32[2,14,14,4], index: 1, kind: output, shape index: {}]
  %s2 = sld [smem:[#allocation0]]
  $region37: #{tpu_custom_call.1} parent=0
    _
  %s4 = ssub.s32 1, %s2
  %s5 = scalar_select 0, %s4, %s2
  loop: start=0, step=1, limit=4
  $region2: #{tpu_custom_call.1} parent=0 // loop_pre_header
    _
  $region3: #{tpu_custom_call.1} parent=0 // loop_header
    %s7 = sphi 0, %s11
    %p8 = scmp.ge.s32.totalorder %s7, 4
    %s17 = sphi 0, %s19
    %s20 = sphi 0, %s17
    %s21 = sphi 0, %s20
    %s37 = sphi 0, %s21
    %s43 = sphi 0, %s45
    %s46 = sphi 0, %s43
    %s47 = sphi 0, %s46
    %s63 = sphi 0, %s47
  $region4: #{tpu_custom_call.1} parent=0 // loop_header_branch
    %10 = sbr.rel (%p8) target = $region8
  $region5: #{tpu_custom_call.1} parent=0 // loop_body
    %s12 = ssub.s32 %s7, 1
    %s13 = ssub.s32 %s7, 2
    %s14 = sadd.s32 %s7, 1
    %s15 = ssub.s32 %s7, %s14
    %p16 = scmp.eq.s32.totalorder %s15, 0
    %s18 = sadd.s32 %s17, 1
    %s19 = scalar_select %p16, %s17, %s18
    %p22 = pneg %p16
    %p23 = scmp.eq.s32.totalorder %s7, 1
    %p24 = por %p22, %p23
    %p25 = scmp.ne.s32.totalorder %s17, %s20
    %p26 = scmp.eq.s32.totalorder %s7, 0
    %p27 = por %p25, %p26
    %p28 = scmp.ne.s32.totalorder %s17, %s20
    %p29 = scmp.eq.s32.totalorder %s12, 1
    %p30 = por %p28, %p29
    %p31 = scmp.ne.s32.totalorder %s20, %s21
    %p32 = scmp.eq.s32.totalorder %s12, 0
    %p33 = por %p31, %p32
    %p34 = scmp.ne.s32.totalorder %s20, %s21
    %p35 = scmp.eq.s32.totalorder %s13, 1
    %p36 = por %p34, %p35
    %p38 = scmp.ne.s32.totalorder %s21, %s37
    %p39 = scmp.eq.s32.totalorder %s13, 0
    %p40 = por %p38, %p39
    %s41 = ssub.s32 %s7, %s14
    %p42 = scmp.eq.s32.totalorder %s41, 0
    %s44 = sadd.s32 %s43, 1
    %s45 = scalar_select %p42, %s43, %s44
    %p48 = pneg %p42
    %p49 = scmp.eq.s32.totalorder %s7, 1
    %p50 = por %p48, %p49
    %p51 = scmp.ne.s32.totalorder %s43, %s46
    %p52 = scmp.eq.s32.totalorder %s7, 0
    %p53 = por %p51, %p52
    %p54 = scmp.ne.s32.totalorder %s43, %s46
    %p55 = scmp.eq.s32.totalorder %s12, 1
    %p56 = por %p54, %p55
    %p57 = scmp.ne.s32.totalorder %s46, %s47
    %p58 = scmp.eq.s32.totalorder %s12, 0
    %p59 = por %p57, %p58
    %p60 = scmp.ne.s32.totalorder %s46, %s47
    %p61 = scmp.eq.s32.totalorder %s13, 1
    %p62 = por %p60, %p61
    %p64 = scmp.ne.s32.totalorder %s47, %s63
    %p65 = scmp.eq.s32.totalorder %s13, 0
    %p66 = por %p64, %p65
    %p67 = scmp.le.s32.totalorder 1, %s7
    %p68 = scmp.lt.s32.totalorder %s7, 3
    %p69 = pnand %p67, %p68
    %p70 = pneg %p69
    // Predicated region
    $region9: #{tpu_custom_call.1} parent=5 // pred_check
      _
    $region10: #{tpu_custom_call.1} parent=5 // pred_check_branch
      %72 = sbr.rel (%p69) target = $region12
    $region11: #{tpu_custom_call.1} parent=5 // pred_region
      %s73 = ssub.s32 %s7, 1
    $region12: #{tpu_custom_call.1} parent=5 // pred_fallthru
      _
    %p74 = scmp.lt.s32.totalorder %s7, 2
    // Predicated region
    $region13: #{tpu_custom_call.1} parent=5 // pred_check
      %p75 = pneg %p74
    $region14: #{tpu_custom_call.1} parent=5 // pred_check_branch
      %77 = sbr.rel (%p75) target = $region16
    $region15: #{tpu_custom_call.1} parent=5 // pred_region
      // Predicated region
      $region17: #{tpu_custom_call.1} parent=15 // pred_check
        %p78 = pneg %p27
      $region18: #{tpu_custom_call.1} parent=15 // pred_check_branch
        %80 = sbr.rel (%p78) target = $region20
      $region19: #{tpu_custom_call.1} parent=15 // pred_region
        %p81 = scmp.lt.s32.totalorder %s7, 1
        %s82 = scalar_select %p81, %s7, 1
        %s83 = smul.addr %s82, 32
        %s84 = smul.addr %s83, 8
        %s85 = scalar_lea.vmem %s0, %s84
      $region20: #{tpu_custom_call.1} parent=15 // pred_fallthru
        _
    $region16: #{tpu_custom_call.1} parent=5 // pred_fallthru
      _
    %p86 = scmp.le.s32.totalorder 1, %s7
    %p87 = scmp.lt.s32.totalorder %s7, 3
    %p88 = pnand %p86, %p87
    %p89 = pneg %p88
    // Predicated region
    $region21: #{tpu_custom_call.1} parent=5 // pred_check
      _
    $region22: #{tpu_custom_call.1} parent=5 // pred_check_branch
      %91 = sbr.rel (%p88) target = $region24
    $region23: #{tpu_custom_call.1} parent=5 // pred_region
      %s92 = ssub.s32 %s7, 1
      %p93 = scmp.lt.s32.totalorder %s12, 1
      %s94 = scalar_select %p93, %s12, 1
      %s95 = smul.addr %s94, 32
      %s96 = smul.addr %s95, 8
      %s97 = scalar_lea.vmem %s0, %s96
      %p98 = pneg %p33
      %p99 = pneg %p30
      %p100 = pneg %p59
      %p101 = pneg %p56
      %p102 = scmp.lt.s32.totalorder %s12, 1
      %s103 = scalar_select %p102, %s12, 1
      %s104 = smul.addr %s103, 28
      %s105 = smul.addr %s104, 8
      %s106 = scalar_lea.vmem %s1, %s105
      %p107 = scmp.lt.s32.totalorder %s12, 1
      %s108 = scalar_select %p107, %s12, 1
      %s109 = smul.addr %s108, 32
      %s110 = smul.addr %s109, 8
      %s111 = scalar_lea.vmem %s0, %s110
      %p112 = scmp.lt.s32.totalorder %s12, 1
      %s113 = scalar_select %p112, %s12, 1
      %s114 = smul.addr %s113, 28
      %s115 = smul.addr %s114, 8
      %s116 = scalar_lea.vmem %s1, %s115
      %v117 = vld [vmem:[%s111] sm:$0xff]
      %v118 = vld [vmem:[%s111 + $0x8] sm:$0x3f]
      %v119 = vld [vmem:[%s111 + $0x10] sm:$0xff]
      %v120 = vld [vmem:[%s111 + $0x18] sm:$0x3f]
      %v121 = vld [vmem:[%s111 + $0x20] sm:$0xff]
      %v122 = vld [vmem:[%s111 + $0x28] sm:$0x3f]
      %v123 = vld [vmem:[%s111 + $0x30] sm:$0xff]
      %v124 = vld [vmem:[%s111 + $0x38] sm:$0x3f]
      %v125 = vld [vmem:[%s111 + $0x40] sm:$0xff]
      %v126 = vld [vmem:[%s111 + $0x48] sm:$0x3f]
      %v127 = vld [vmem:[%s111 + $0x50] sm:$0xff]
      %v128 = vld [vmem:[%s111 + $0x58] sm:$0x3f]
      %v129 = vld [vmem:[%s111 + $0x60] sm:$0xff]
      %v130 = vld [vmem:[%s111 + $0x68] sm:$0x3f]
      %v131 = vld [vmem:[%s111 + $0x70] sm:$0xff]
      %v132 = vld [vmem:[%s111 + $0x78] sm:$0x3f]
      %v133 = vld [vmem:[%s111 + $0x80] sm:$0xff]
      %v134 = vld [vmem:[%s111 + $0x88] sm:$0x3f]
      %v135 = vld [vmem:[%s111 + $0x90] sm:$0xff]
      %v136 = vld [vmem:[%s111 + $0x98] sm:$0x3f]
      %v137 = vld [vmem:[%s111 + $0xa0] sm:$0xff]
      %v138 = vld [vmem:[%s111 + $0xa8] sm:$0x3f]
      %v139 = vld [vmem:[%s111 + $0xb0] sm:$0xff]
      %v140 = vld [vmem:[%s111 + $0xb8] sm:$0x3f]
      %v141 = vld [vmem:[%s111 + $0xc0] sm:$0xff]
      %v142 = vld [vmem:[%s111 + $0xc8] sm:$0x3f]
      %v143 = vld [vmem:[%s111 + $0xd0] sm:$0xff]
      %v144 = vld [vmem:[%s111 + $0xd8] sm:$0x3f]
      %v145 = vld [vmem:[%s111 + $0xe0] sm:$0xff]
      %v146 = vld [vmem:[%s111 + $0xe8] sm:$0x3f]
      %v147 = vld [vmem:[%s111 + $0xf0] sm:$0xff]
      %v148 = vld [vmem:[%s111 + $0xf8] sm:$0x3f]
      %v149 = vmul.f32 %v117, 0.3045043
      %v150 = vmul.f32 %v118, 0.3045043
      %v151 = vmul.f32 %v119, 0.3045043
      %v152 = vmul.f32 %v120, 0.3045043
      %v153 = vmul.f32 %v121, 0.3045043
      %v154 = vmul.f32 %v122, 0.3045043
      %v155 = vmul.f32 %v123, 0.3045043
      %v156 = vmul.f32 %v124, 0.3045043
      %v157 = vmul.f32 %v125, 0.3045043
      %v158 = vmul.f32 %v126, 0.3045043
      %v159 = vmul.f32 %v127, 0.3045043
      %v160 = vmul.f32 %v128, 0.3045043
      %v161 = vmul.f32 %v129, 0.3045043
      %v162 = vmul.f32 %v130, 0.3045043
      %v163 = vmul.f32 %v131, 0.3045043
      %v164 = vmul.f32 %v132, 0.3045043
      %v165 = vmul.f32 %v133, 0.3045043
      %v166 = vmul.f32 %v134, 0.3045043
      %v167 = vmul.f32 %v135, 0.3045043
      %v168 = vmul.f32 %v136, 0.3045043
      %v169 = vmul.f32 %v137, 0.3045043
      %v170 = vmul.f32 %v138, 0.3045043
      %v171 = vmul.f32 %v139, 0.3045043
      %v172 = vmul.f32 %v140, 0.3045043
      %v173 = vmul.f32 %v141, 0.3045043
      %v174 = vmul.f32 %v142, 0.3045043
      %v175 = vmul.f32 %v143, 0.3045043
      %v176 = vmul.f32 %v144, 0.3045043
      %v177 = vmul.f32 %v145, 0.3045043
      %v178 = vmul.f32 %v146, 0.3045043
      %v179 = vmul.f32 %v147, 0.3045043
      %v180 = vmul.f32 %v148, 0.3045043
      %v181 = vld [vmem:[%s111 + $0x1] sm:$0xff]
      %v182 = vld [vmem:[%s111 + $0x9] sm:$0x3f]
      %v183 = vld [vmem:[%s111 + $0x11] sm:$0xff]
      %v184 = vld [vmem:[%s111 + $0x19] sm:$0x3f]
      %v185 = vld [vmem:[%s111 + $0x21] sm:$0xff]
      %v186 = vld [vmem:[%s111 + $0x29] sm:$0x3f]
      %v187 = vld [vmem:[%s111 + $0x31] sm:$0xff]
      %v188 = vld [vmem:[%s111 + $0x39] sm:$0x3f]
      %v189 = vld [vmem:[%s111 + $0x41] sm:$0xff]
      %v190 = vld [vmem:[%s111 + $0x49] sm:$0x3f]
      %v191 = vld [vmem:[%s111 + $0x51] sm:$0xff]
      %v192 = vld [vmem:[%s111 + $0x59] sm:$0x3f]
      %v193 = vld [vmem:[%s111 + $0x61] sm:$0xff]
      %v194 = vld [vmem:[%s111 + $0x69] sm:$0x3f]
      %v195 = vld [vmem:[%s111 + $0x71] sm:$0xff]
      %v196 = vld [vmem:[%s111 + $0x79] sm:$0x3f]
      %v197 = vld [vmem:[%s111 + $0x81] sm:$0xff]
      %v198 = vld [vmem:[%s111 + $0x89] sm:$0x3f]
      %v199 = vld [vmem:[%s111 + $0x91] sm:$0xff]
      %v200 = vld [vmem:[%s111 + $0x99] sm:$0x3f]
      %v201 = vld [vmem:[%s111 + $0xa1] sm:$0xff]
      %v202 = vld [vmem:[%s111 + $0xa9] sm:$0x3f]
      %v203 = vld [vmem:[%s111 + $0xb1] sm:$0xff]
      %v204 = vld [vmem:[%s111 + $0xb9] sm:$0x3f]
      %v205 = vld [vmem:[%s111 + $0xc1] sm:$0xff]
      %v206 = vld [vmem:[%s111 + $0xc9] sm:$0x3f]
      %v207 = vld [vmem:[%s111 + $0xd1] sm:$0xff]
      %v208 = vld [vmem:[%s111 + $0xd9] sm:$0x3f]
      %v209 = vld [vmem:[%s111 + $0xe1] sm:$0xff]
      %v210 = vld [vmem:[%s111 + $0xe9] sm:$0x3f]
      %v211 = vld [vmem:[%s111 + $0xf1] sm:$0xff]
      %v212 = vld [vmem:[%s111 + $0xf9] sm:$0x3f]
      %v213 = vmul.f32 %v181, 0.3909913
      %v214 = vmul.f32 %v182, 0.3909913
      %v215 = vmul.f32 %v183, 0.3909913
      %v216 = vmul.f32 %v184, 0.3909913
      %v217 = vmul.f32 %v185, 0.3909913
      %v218 = vmul.f32 %v186, 0.3909913
      %v219 = vmul.f32 %v187, 0.3909913
      %v220 = vmul.f32 %v188, 0.3909913
      %v221 = vmul.f32 %v189, 0.3909913
      %v222 = vmul.f32 %v190, 0.3909913
      %v223 = vmul.f32 %v191, 0.3909913
      %v224 = vmul.f32 %v192, 0.3909913
      %v225 = vmul.f32 %v193, 0.3909913
      %v226 = vmul.f32 %v194, 0.3909913
      %v227 = vmul.f32 %v195, 0.3909913
      %v228 = vmul.f32 %v196, 0.3909913
      %v229 = vmul.f32 %v197, 0.3909913
      %v230 = vmul.f32 %v198, 0.3909913
      %v231 = vmul.f32 %v199, 0.3909913
      %v232 = vmul.f32 %v200, 0.3909913
      %v233 = vmul.f32 %v201, 0.3909913
      %v234 = vmul.f32 %v202, 0.3909913
      %v235 = vmul.f32 %v203, 0.3909913
      %v236 = vmul.f32 %v204, 0.3909913
      %v237 = vmul.f32 %v205, 0.3909913
      %v238 = vmul.f32 %v206, 0.3909913
      %v239 = vmul.f32 %v207, 0.3909913
      %v240 = vmul.f32 %v208, 0.3909913
      %v241 = vmul.f32 %v209, 0.3909913
      %v242 = vmul.f32 %v210, 0.3909913
      %v243 = vmul.f32 %v211, 0.3909913
      %v244 = vmul.f32 %v212, 0.3909913
      %v245 = vadd.f32 %v149, %v213
      %v246 = vadd.f32 %v150, %v214
      %v247 = vadd.f32 %v151, %v215
      %v248 = vadd.f32 %v152, %v216
      %v249 = vadd.f32 %v153, %v217
      %v250 = vadd.f32 %v154, %v218
      %v251 = vadd.f32 %v155, %v219
      %v252 = vadd.f32 %v156, %v220
      %v253 = vadd.f32 %v157, %v221
      %v254 = vadd.f32 %v158, %v222
      %v255 = vadd.f32 %v159, %v223
      %v256 = vadd.f32 %v160, %v224
      %v257 = vadd.f32 %v161, %v225
      %v258 = vadd.f32 %v162, %v226
      %v259 = vadd.f32 %v163, %v227
      %v260 = vadd.f32 %v164, %v228
      %v261 = vadd.f32 %v165, %v229
      %v262 = vadd.f32 %v166, %v230
      %v263 = vadd.f32 %v167, %v231
      %v264 = vadd.f32 %v168, %v232
      %v265 = vadd.f32 %v169, %v233
      %v266 = vadd.f32 %v170, %v234
      %v267 = vadd.f32 %v171, %v235
      %v268 = vadd.f32 %v172, %v236
      %v269 = vadd.f32 %v173, %v237
      %v270 = vadd.f32 %v174, %v238
      %v271 = vadd.f32 %v175, %v239
      %v272 = vadd.f32 %v176, %v240
      %v273 = vadd.f32 %v177, %v241
      %v274 = vadd.f32 %v178, %v242
      %v275 = vadd.f32 %v179, %v243
      %v276 = vadd.f32 %v180, %v244
      %v277 = vld [vmem:[%s111 + $0x2] sm:$0xff]
      %v278 = vld [vmem:[%s111 + $0xa] sm:$0x3f]
      %v279 = vld [vmem:[%s111 + $0x12] sm:$0xff]
      %v280 = vld [vmem:[%s111 + $0x1a] sm:$0x3f]
      %v281 = vld [vmem:[%s111 + $0x22] sm:$0xff]
      %v282 = vld [vmem:[%s111 + $0x2a] sm:$0x3f]
      %v283 = vld [vmem:[%s111 + $0x32] sm:$0xff]
      %v284 = vld [vmem:[%s111 + $0x3a] sm:$0x3f]
      %v285 = vld [vmem:[%s111 + $0x42] sm:$0xff]
      %v286 = vld [vmem:[%s111 + $0x4a] sm:$0x3f]
      %v287 = vld [vmem:[%s111 + $0x52] sm:$0xff]
      %v288 = vld [vmem:[%s111 + $0x5a] sm:$0x3f]
      %v289 = vld [vmem:[%s111 + $0x62] sm:$0xff]
      %v290 = vld [vmem:[%s111 + $0x6a] sm:$0x3f]
      %v291 = vld [vmem:[%s111 + $0x72] sm:$0xff]
      %v292 = vld [vmem:[%s111 + $0x7a] sm:$0x3f]
      %v293 = vld [vmem:[%s111 + $0x82] sm:$0xff]
      %v294 = vld [vmem:[%s111 + $0x8a] sm:$0x3f]
      %v295 = vld [vmem:[%s111 + $0x92] sm:$0xff]
      %v296 = vld [vmem:[%s111 + $0x9a] sm:$0x3f]
      %v297 = vld [vmem:[%s111 + $0xa2] sm:$0xff]
      %v298 = vld [vmem:[%s111 + $0xaa] sm:$0x3f]
      %v299 = vld [vmem:[%s111 + $0xb2] sm:$0xff]
      %v300 = vld [vmem:[%s111 + $0xba] sm:$0x3f]
      %v301 = vld [vmem:[%s111 + $0xc2] sm:$0xff]
      %v302 = vld [vmem:[%s111 + $0xca] sm:$0x3f]
      %v303 = vld [vmem:[%s111 + $0xd2] sm:$0xff]
      %v304 = vld [vmem:[%s111 + $0xda] sm:$0x3f]
      %v305 = vld [vmem:[%s111 + $0xe2] sm:$0xff]
      %v306 = vld [vmem:[%s111 + $0xea] sm:$0x3f]
      %v307 = vld [vmem:[%s111 + $0xf2] sm:$0xff]
      %v308 = vld [vmem:[%s111 + $0xfa] sm:$0x3f]
      %v309 = vmul.f32 %v277, 0.3045043
      %v310 = vmul.f32 %v278, 0.3045043
      %v311 = vmul.f32 %v279, 0.3045043
      %v312 = vmul.f32 %v280, 0.3045043
      %v313 = vmul.f32 %v281, 0.3045043
      %v314 = vmul.f32 %v282, 0.3045043
      %v315 = vmul.f32 %v283, 0.3045043
      %v316 = vmul.f32 %v284, 0.3045043
      %v317 = vmul.f32 %v285, 0.3045043
      %v318 = vmul.f32 %v286, 0.3045043
      %v319 = vmul.f32 %v287, 0.3045043
      %v320 = vmul.f32 %v288, 0.3045043
      %v321 = vmul.f32 %v289, 0.3045043
      %v322 = vmul.f32 %v290, 0.3045043
      %v323 = vmul.f32 %v291, 0.3045043
      %v324 = vmul.f32 %v292, 0.3045043
      %v325 = vmul.f32 %v293, 0.3045043
      %v326 = vmul.f32 %v294, 0.3045043
      %v327 = vmul.f32 %v295, 0.3045043
      %v328 = vmul.f32 %v296, 0.3045043
      %v329 = vmul.f32 %v297, 0.3045043
      %v330 = vmul.f32 %v298, 0.3045043
      %v331 = vmul.f32 %v299, 0.3045043
      %v332 = vmul.f32 %v300, 0.3045043
      %v333 = vmul.f32 %v301, 0.3045043
      %v334 = vmul.f32 %v302, 0.3045043
      %v335 = vmul.f32 %v303, 0.3045043
      %v336 = vmul.f32 %v304, 0.3045043
      %v337 = vmul.f32 %v305, 0.3045043
      %v338 = vmul.f32 %v306, 0.3045043
      %v339 = vmul.f32 %v307, 0.3045043
      %v340 = vmul.f32 %v308, 0.3045043
      %v341 = vadd.f32 %v245, %v309
      %v342 = vadd.f32 %v246, %v310
      %v343 = vadd.f32 %v247, %v311
      %v344 = vadd.f32 %v248, %v312
      %v345 = vadd.f32 %v249, %v313
      %v346 = vadd.f32 %v250, %v314
      %v347 = vadd.f32 %v251, %v315
      %v348 = vadd.f32 %v252, %v316
      %v349 = vadd.f32 %v253, %v317
      %v350 = vadd.f32 %v254, %v318
      %v351 = vadd.f32 %v255, %v319
      %v352 = vadd.f32 %v256, %v320
      %v353 = vadd.f32 %v257, %v321
      %v354 = vadd.f32 %v258, %v322
      %v355 = vadd.f32 %v259, %v323
      %v356 = vadd.f32 %v260, %v324
      %v357 = vadd.f32 %v261, %v325
      %v358 = vadd.f32 %v262, %v326
      %v359 = vadd.f32 %v263, %v327
      %v360 = vadd.f32 %v264, %v328
      %v361 = vadd.f32 %v265, %v329
      %v362 = vadd.f32 %v266, %v330
      %v363 = vadd.f32 %v267, %v331
      %v364 = vadd.f32 %v268, %v332
      %v365 = vadd.f32 %v269, %v333
      %v366 = vadd.f32 %v270, %v334
      %v367 = vadd.f32 %v271, %v335
      %v368 = vadd.f32 %v272, %v336
      %v369 = vadd.f32 %v273, %v337
      %v370 = vadd.f32 %v274, %v338
      %v371 = vadd.f32 %v275, %v339
      %v372 = vadd.f32 %v276, %v340
      %v373 = vmul.f32 %v341, 0.3045043
      %v374 = vmul.f32 %v342, 0.3045043
      %v375 = vmul.f32 %v343, 0.3045043
      %v376 = vmul.f32 %v344, 0.3045043
      %v377 = vmul.f32 %v345, 0.3045043
      %v378 = vmul.f32 %v346, 0.3045043
      %v379 = vmul.f32 %v347, 0.3045043
      %v380 = vmul.f32 %v348, 0.3045043
      %v381 = vmul.f32 %v349, 0.3045043
      %v382 = vmul.f32 %v350, 0.3045043
      %v383 = vmul.f32 %v351, 0.3045043
      %v384 = vmul.f32 %v352, 0.3045043
      %v385 = vmul.f32 %v353, 0.3045043
      %v386 = vmul.f32 %v354, 0.3045043
      %v387 = vmul.f32 %v355, 0.3045043
      %v388 = vmul.f32 %v356, 0.3045043
      %v389 = vmul.f32 %v357, 0.3045043
      %v390 = vmul.f32 %v358, 0.3045043
      %v391 = vmul.f32 %v359, 0.3045043
      %v392 = vmul.f32 %v360, 0.3045043
      %v393 = vmul.f32 %v361, 0.3045043
      %v394 = vmul.f32 %v362, 0.3045043
      %v395 = vmul.f32 %v363, 0.3045043
      %v396 = vmul.f32 %v364, 0.3045043
      %v397 = vmul.f32 %v365, 0.3045043
      %v398 = vmul.f32 %v366, 0.3045043
      %v399 = vmul.f32 %v367, 0.3045043
      %v400 = vmul.f32 %v368, 0.3045043
      %v401 = vmul.f32 %v343, 0.3909913
      %v402 = vmul.f32 %v344, 0.3909913
      %v403 = vmul.f32 %v345, 0.3909913
      %v404 = vmul.f32 %v346, 0.3909913
      %v405 = vmul.f32 %v347, 0.3909913
      %v406 = vmul.f32 %v348, 0.3909913
      %v407 = vmul.f32 %v349, 0.3909913
      %v408 = vmul.f32 %v350, 0.3909913
      %v409 = vmul.f32 %v351, 0.3909913
      %v410 = vmul.f32 %v352, 0.3909913
      %v411 = vmul.f32 %v353, 0.3909913
      %v412 = vmul.f32 %v354, 0.3909913
      %v413 = vmul.f32 %v355, 0.3909913
      %v414 = vmul.f32 %v356, 0.3909913
      %v415 = vmul.f32 %v357, 0.3909913
      %v416 = vmul.f32 %v358, 0.3909913
      %v417 = vmul.f32 %v359, 0.3909913
      %v418 = vmul.f32 %v360, 0.3909913
      %v419 = vmul.f32 %v361, 0.3909913
      %v420 = vmul.f32 %v362, 0.3909913
      %v421 = vmul.f32 %v363, 0.3909913
      %v422 = vmul.f32 %v364, 0.3909913
      %v423 = vmul.f32 %v365, 0.3909913
      %v424 = vmul.f32 %v366, 0.3909913
      %v425 = vmul.f32 %v367, 0.3909913
      %v426 = vmul.f32 %v368, 0.3909913
      %v427 = vmul.f32 %v369, 0.3909913
      %v428 = vmul.f32 %v370, 0.3909913
      %v429 = vadd.f32 %v373, %v401
      %v430 = vadd.f32 %v374, %v402
      %v431 = vadd.f32 %v375, %v403
      %v432 = vadd.f32 %v376, %v404
      %v433 = vadd.f32 %v377, %v405
      %v434 = vadd.f32 %v378, %v406
      %v435 = vadd.f32 %v379, %v407
      %v436 = vadd.f32 %v380, %v408
      %v437 = vadd.f32 %v381, %v409
      %v438 = vadd.f32 %v382, %v410
      %v439 = vadd.f32 %v383, %v411
      %v440 = vadd.f32 %v384, %v412
      %v441 = vadd.f32 %v385, %v413
      %v442 = vadd.f32 %v386, %v414
      %v443 = vadd.f32 %v387, %v415
      %v444 = vadd.f32 %v388, %v416
      %v445 = vadd.f32 %v389, %v417
      %v446 = vadd.f32 %v390, %v418
      %v447 = vadd.f32 %v391, %v419
      %v448 = vadd.f32 %v392, %v420
      %v449 = vadd.f32 %v393, %v421
      %v450 = vadd.f32 %v394, %v422
      %v451 = vadd.f32 %v395, %v423
      %v452 = vadd.f32 %v396, %v424
      %v453 = vadd.f32 %v397, %v425
      %v454 = vadd.f32 %v398, %v426
      %v455 = vadd.f32 %v399, %v427
      %v456 = vadd.f32 %v400, %v428
      %v457 = vmul.f32 %v369, 0.3045043
      %v458 = vmul.f32 %v370, 0.3045043
      %v459 = vmul.f32 %v371, 0.3045043
      %v460 = vmul.f32 %v372, 0.3045043
      %v461 = vadd.f32 %v429, %v377
      %v462 = vadd.f32 %v430, %v378
      %v463 = vadd.f32 %v431, %v379
      %v464 = vadd.f32 %v432, %v380
      %v465 = vadd.f32 %v433, %v381
      %v466 = vadd.f32 %v434, %v382
      %v467 = vadd.f32 %v435, %v383
      %v468 = vadd.f32 %v436, %v384
      %v469 = vadd.f32 %v437, %v385
      %v470 = vadd.f32 %v438, %v386
      %v471 = vadd.f32 %v439, %v387
      %v472 = vadd.f32 %v440, %v388
      %v473 = vadd.f32 %v441, %v389
      %v474 = vadd.f32 %v442, %v390
      %v475 = vadd.f32 %v443, %v391
      %v476 = vadd.f32 %v444, %v392
      %v477 = vadd.f32 %v445, %v393
      %v478 = vadd.f32 %v446, %v394
      %v479 = vadd.f32 %v447, %v395
      %v480 = vadd.f32 %v448, %v396
      %v481 = vadd.f32 %v449, %v397
      %v482 = vadd.f32 %v450, %v398
      %v483 = vadd.f32 %v451, %v399
      %v484 = vadd.f32 %v452, %v400
      %v485 = vadd.f32 %v453, %v457
      %v486 = vadd.f32 %v454, %v458
      %v487 = vadd.f32 %v455, %v459
      %v488 = vadd.f32 %v456, %v460
      %vm489 = vcmask 31744
      %490 = vst.msk [vmem:[%s116] sm:$0xff] %vm489, %v461
      %vm491 = vcmask 29696
      %492 = vst.msk [vmem:[%s116 + $0x8] sm:$0x3f] %vm491, %v462
      %493 = vst.msk [vmem:[%s116 + $0x10] sm:$0xff] %vm489, %v463
      %494 = vst.msk [vmem:[%s116 + $0x18] sm:$0x3f] %vm491, %v464
      %495 = vst.msk [vmem:[%s116 + $0x20] sm:$0xff] %vm489, %v465
      %496 = vst.msk [vmem:[%s116 + $0x28] sm:$0x3f] %vm491, %v466
      %497 = vst.msk [vmem:[%s116 + $0x30] sm:$0xff] %vm489, %v467
      %498 = vst.msk [vmem:[%s116 + $0x38] sm:$0x3f] %vm491, %v468
      %499 = vst.msk [vmem:[%s116 + $0x40] sm:$0xff] %vm489, %v469
      %500 = vst.msk [vmem:[%s116 + $0x48] sm:$0x3f] %vm491, %v470
      %501 = vst.msk [vmem:[%s116 + $0x50] sm:$0xff] %vm489, %v471
      %502 = vst.msk [vmem:[%s116 + $0x58] sm:$0x3f] %vm491, %v472
      %503 = vst.msk [vmem:[%s116 + $0x60] sm:$0xff] %vm489, %v473
      %504 = vst.msk [vmem:[%s116 + $0x68] sm:$0x3f] %vm491, %v474
      %505 = vst.msk [vmem:[%s116 + $0x70] sm:$0xff] %vm489, %v475
      %506 = vst.msk [vmem:[%s116 + $0x78] sm:$0x3f] %vm491, %v476
      %507 = vst.msk [vmem:[%s116 + $0x80] sm:$0xff] %vm489, %v477
      %508 = vst.msk [vmem:[%s116 + $0x88] sm:$0x3f] %vm491, %v478
      %509 = vst.msk [vmem:[%s116 + $0x90] sm:$0xff] %vm489, %v479
      %510 = vst.msk [vmem:[%s116 + $0x98] sm:$0x3f] %vm491, %v480
      %511 = vst.msk [vmem:[%s116 + $0xa0] sm:$0xff] %vm489, %v481
      %512 = vst.msk [vmem:[%s116 + $0xa8] sm:$0x3f] %vm491, %v482
      %513 = vst.msk [vmem:[%s116 + $0xb0] sm:$0xff] %vm489, %v483
      %514 = vst.msk [vmem:[%s116 + $0xb8] sm:$0x3f] %vm491, %v484
      %515 = vst.msk [vmem:[%s116 + $0xc0] sm:$0xff] %vm489, %v485
      %516 = vst.msk [vmem:[%s116 + $0xc8] sm:$0x3f] %vm491, %v486
      %517 = vst.msk [vmem:[%s116 + $0xd0] sm:$0xff] %vm489, %v487
      %518 = vst.msk [vmem:[%s116 + $0xd8] sm:$0x3f] %vm491, %v488
      %p519 = scmp.lt.s32.totalorder %s12, 1
      %s520 = scalar_select %p519, %s12, 1
      %s521 = smul.addr %s520, 28
      %s522 = smul.addr %s521, 8
      %s523 = scalar_lea.vmem %s1, %s522
      // Predicated region
      $region25: #{tpu_custom_call.1} parent=23 // pred_check
        %p524 = pneg %p56
      $region26: #{tpu_custom_call.1} parent=23 // pred_check_branch
        %526 = sbr.rel (%p524) target = $region28
      $region27: #{tpu_custom_call.1} parent=23 // pred_region
        _
      $region28: #{tpu_custom_call.1} parent=23 // pred_fallthru
        _
    $region24: #{tpu_custom_call.1} parent=5 // pred_fallthru
      _
    %p527 = scmp.le.s32.totalorder 2, %s7
    // Predicated region
    $region29: #{tpu_custom_call.1} parent=5 // pred_check
      %p528 = pneg %p527
    $region30: #{tpu_custom_call.1} parent=5 // pred_check_branch
      %530 = sbr.rel (%p528) target = $region32
    $region31: #{tpu_custom_call.1} parent=5 // pred_region
      %s531 = ssub.s32 %s7, 2
      // Predicated region
      $region33: #{tpu_custom_call.1} parent=31 // pred_check
        %p532 = pneg %p62
      $region34: #{tpu_custom_call.1} parent=31 // pred_check_branch
        %534 = sbr.rel (%p532) target = $region36
      $region35: #{tpu_custom_call.1} parent=31 // pred_region
        %p535 = scmp.lt.s32.totalorder %s13, 1
        %s536 = scalar_select %p535, %s13, 1
        %s537 = smul.addr %s536, 28
        %s538 = smul.addr %s537, 8
        %s539 = scalar_lea.vmem %s1, %s538
      $region36: #{tpu_custom_call.1} parent=31 // pred_fallthru
        _
    $region32: #{tpu_custom_call.1} parent=5 // pred_fallthru
      _
  $region6: #{tpu_custom_call.1} parent=0 // loop_footer
    %s11 = sadd.s32 1, %s7
  $region7: #{tpu_custom_call.1} parent=0 // loop_footer_branch
    %6 = sbr.rel target = $region3
  $region8: #{tpu_custom_call.1} parent=0 // loop_exit
    _

</llo_original>
